<compile_context>
chip_gen: v5e
topology: v5e:2x2
jax: 0.10.0
libtpu: 0.0.40
codegen_flags: <defaults>
</compile_context>

<pallas_src>
import functools

import jax
import jax.numpy as jnp
from jax import lax
from jax.experimental import pallas as pl
from jax.experimental.pallas import tpu as pltpu

_LANE = 128
_SUBLANE = 8


def _round_up(a, b):
    return ((a + b - 1) // b) * b


def _sublane_multiple(*dtypes):
    """Row-tile rounding so sub-32-bit inputs keep their native (16/32,128) tiles."""
    mult = _SUBLANE
    for dt in dtypes:
        itemsize = jnp.dtype(dt).itemsize
        mult = max(mult, _SUBLANE * max(1, 4 // max(1, itemsize)))
    return mult


def _device_config():
    """Generation-dependent tiling / reduction strategy."""
    kind = ""
    try:
        kind = jax.devices()[0].device_kind.lower()
    except Exception:
        pass
    if "v7" in kind:
        # 64 MiB VMEM per TensorCore, 2 TCs/chip: smaller tiles, per-tile
        # partials on a "parallel" grid so both cores issue DMA.
        return dict(max_tile_r=4096, vmem_limit=32 * 1024 * 1024,
                    use_partials=True, want_multi_tile=True)
    # v5e / v6e (and unknown/interpret): 1 TC, 128 MiB VMEM -> bigger tiles and
    # a resident VMEM accumulator (no per-tile HBM writeback, no XLA reduce).
    return dict(max_tile_r=8192, vmem_limit=64 * 1024 * 1024,
                use_partials=False, want_multi_tile=False)


def _focal_loss_kernel(x_ref, t_ref, out_ref, *, gamma, alpha, n_valid, tile_r,
                       need_mask, binary_targets, accumulate, sub_out):
    """Per-tile focal loss + reduction to a (sub_out, 128) partial sum.

    x_ref   : (tile_r, 128) VMEM - logits tile (any float dtype)
    t_ref   : (tile_r, 128) VMEM - targets tile
    out_ref : accumulate=True  -> (sub_out, 128) f32 resident accumulator
              accumulate=False -> (1, sub_out, 128) f32 per-tile partial
    """
    x = x_ref[...].astype(jnp.float32)
    t = t_ref[...].astype(jnp.float32)

    # Numerically stable BCE-with-logits (matches torch's formulation):
    #   bce = max(x, 0) - x * t + log1p(exp(-|x|))
    e = jnp.exp(-jnp.abs(x))                      # EUP #1
    bce = jnp.maximum(x, 0.0) - x * t + jnp.log1p(e)   # EUP #2 (log1p)

    if binary_targets:
        # For t in {0,1}: exp(x*t - max(x,0)) == where((1-2t)*x > 0, e, 1),
        # so pt = exp(-bce) needs no extra exp - only a near-free reciprocal.
        num = jnp.where((1.0 - 2.0 * t) * x > 0.0, e, 1.0)
        pt = num * pl.reciprocal(1.0 + e, approx=True)
    else:
        pt = jnp.exp(-bce)                        # EUP #3 (general / soft targets)

    w = 1.0 - pt
    if gamma == 2.0:
        wg = w * w                                # VALU only; no exp/log pow path
    elif gamma == 1.0:
        wg = w
    else:
        # Guard pow's exp(gamma*log(.)) lowering against log(0).
        wg = jnp.where(w > 0.0, jnp.power(jnp.maximum(w, 1e-30), gamma), 0.0)

    focal = (alpha * wg) * bce

    if need_mask:
        # Zero everything past the (static) valid element count n_valid: the
        # lane-alignment pad and any garbage rows of a ragged trailing block.
        full_rows = n_valid // _LANE
        lane_rem = n_valid % _LANE
        row = (pl.program_id(0) * tile_r
               + lax.broadcasted_iota(jnp.int32, focal.shape, 0))
        lane = lax.broadcasted_iota(jnp.int32, focal.shape, 1)
        valid = (row < full_rows) | ((row == full_rows) & (lane < lane_rem))
        focal = jnp.where(valid, focal, 0.0)

    rows, cols = focal.shape
    if sub_out == _SUBLANE:
        # (tile_r, 128) -> (tile_r//8, 8, 128) is a free re-tiling; the axis-0
        # sum is pure cross-vreg VALU adds (no XLU tree, no vector->scalar).
        partial = jnp.sum(focal.reshape(rows // _SUBLANE, _SUBLANE, cols), axis=0)
    else:
        # Only reachable for a single tiny full-array block (rows % 8 != 0).
        partial = jnp.sum(focal, axis=0, keepdims=True)

    if accumulate:
        @pl.when(pl.program_id(0) == 0)
        def _():
            out_ref[...] = jnp.zeros_like(out_ref)

        out_ref[...] += partial
    else:
        out_ref[0] = partial


def focal_loss(inputs, targets, gamma=2.0, alpha=0.25, binary_targets=False):
    """Pallas implementation of FocalLoss.forward (mean reduction).

    Set binary_targets=True when targets are known to be exactly {0, 1} to use
    the 2-transcendental fast path; the default path supports soft targets.
    """
    assert inputs.shape == targets.shape
    n = int(inputs.size)
    assert n > 0
    cfg = _device_config()

    rows = -(-n // _LANE)                         # rows of 128 lanes
    lane_pad = rows * _LANE - n

    x = inputs.reshape(-1)
    t = targets.reshape(-1)
    if lane_pad:
        # Sub-row (<128 element) alignment pad only, so the flat stream can be
        # viewed lane-dense as (rows, 128); padded elements are masked out
        # inside the kernel (no analytic correction needed).
        # TODO(synk): a fully copy-free path for n % 128 != 0 would need 1-D
        # block support; not worth it for a <1-row pad.
        x = jnp.pad(x, (0, lane_pad))
        t = jnp.pad(t, (0, lane_pad))
    x2 = x.reshape(rows, _LANE)
    t2 = t.reshape(rows, _LANE)

    mult = _sublane_multiple(inputs.dtype, targets.dtype)
    tile_r = min(cfg["max_tile_r"], _round_up(rows, mult))
    num_tiles = -(-rows // tile_r)
    if num_tiles == 1:
        if cfg["want_multi_tile"] and rows > mult:
            # v7x: make the "parallel" grid axis span both TensorCores.
            half = _round_up(-(-rows // 2), mult)
            if half < rows:
                tile_r = half
                num_tiles = -(-rows // tile_r)
        if num_tiles == 1:
            tile_r = rows                          # single block == full array dim

    need_mask = (num_tiles * tile_r * _LANE) != n
    sub_out = _SUBLANE if tile_r % _SUBLANE == 0 else 1

    kernel = functools.partial(
        _focal_loss_kernel,
        gamma=float(gamma), alpha=float(alpha),
        n_valid=n, tile_r=tile_r, need_mask=need_mask,
        binary_targets=bool(binary_targets),
        accumulate=not cfg["use_partials"],
        sub_out=sub_out,
    )

    if cfg["use_partials"]:
        # v7x: per-tile partials, "parallel" grid (megacore-shardable).
        out_shape = jax.ShapeDtypeStruct((num_tiles, sub_out, _LANE), jnp.float32)
        out_spec = pl.BlockSpec((1, sub_out, _LANE), lambda i: (i, 0, 0))
        semantics = ("parallel",)
    else:
        # v5e/v6e: single resident VMEM accumulator across the grid.
        out_shape = jax.ShapeDtypeStruct((sub_out, _LANE), jnp.float32)
        out_spec = pl.BlockSpec((sub_out, _LANE), lambda i: (0, 0))
        semantics = ("arbitrary",)

    partial_sums = pl.pallas_call(
        kernel,
        out_shape=out_shape,
        grid=(num_tiles,),
        in_specs=[
            pl.BlockSpec((tile_r, _LANE), lambda i: (i, 0)),  # logits tile
            pl.BlockSpec((tile_r, _LANE), lambda i: (i, 0)),  # targets tile
        ],
        out_specs=out_spec,
        compiler_params=pltpu.CompilerParams(
            dimension_semantics=semantics,
            vmem_limit_bytes=cfg["vmem_limit"],
        ),
    )(x2, t2)

    mean = jnp.sum(partial_sums) / jnp.float32(n)
    out_dtype = inputs.dtype if jnp.issubdtype(inputs.dtype, jnp.floating) else jnp.float32
    return mean.astype(out_dtype)


def _focal_loss_ref(inputs, targets, gamma=2.0, alpha=0.25):
    """Pure-JAX reference of the PyTorch module for a sanity check."""
    x = inputs.astype(jnp.float32)
    t = targets.astype(jnp.float32)
    bce = jnp.maximum(x, 0.0) - x * t + jnp.log1p(jnp.exp(-jnp.abs(x)))
    pt = jnp.exp(-bce)
    return jnp.mean(alpha * (1.0 - pt) ** gamma * bce)


if __name__ == "__main__":
    key = jax.random.PRNGKey(0)
    k1, k2, k3, k4, k5, k6 = jax.random.split(key, 6)

    # Small NCHW shape consistent with a typical segmentation head output.
    B, C, H, W = 2, 4, 16, 16
    logits = jax.random.normal(k1, (B, C, H, W), dtype=jnp.float32)
    targets = jax.random.bernoulli(k2, p=0.3, shape=(B, C, H, W)).astype(jnp.float32)

    out = jax.block_until_ready(focal_loss(logits, targets, gamma=2.0, alpha=0.25))
    ref = _focal_loss_ref(logits, targets, gamma=2.0, alpha=0.25)
    assert jnp.allclose(out, ref, rtol=1e-5, atol=1e-6), (out, ref)

    # Ragged element count (n % 128 != 0): exercises the in-kernel tail mask.
    shp = (2, 3, 15, 17)
    logits2 = jax.random.normal(k3, shp, dtype=jnp.float32)
    targets2 = jax.random.bernoulli(k4, p=0.5, shape=shp).astype(jnp.float32)
    out2 = jax.block_until_ready(focal_loss(logits2, targets2, gamma=2.0, alpha=0.25))
    ref2 = _focal_loss_ref(logits2, targets2, gamma=2.0, alpha=0.25)
    assert jnp.allclose(out2, ref2, rtol=1e-5, atol=1e-6), (out2, ref2)

    # bf16 inputs streamed without a wrapper upcast + binary-target fast path
    # (approx reciprocal + bf16 inputs -> looser tolerance).
    logits3 = jax.random.normal(k5, (B, C, H, W), dtype=jnp.bfloat16)
    targets3 = jax.random.bernoulli(k6, p=0.3, shape=(B, C, H, W)).astype(jnp.bfloat16)
    out3 = jax.block_until_ready(
        focal_loss(logits3, targets3, gamma=2.0, alpha=0.25, binary_targets=True))
    ref3 = _focal_loss_ref(logits3, targets3, gamma=2.0, alpha=0.25)
    assert jnp.allclose(jnp.float32(out3), ref3, rtol=1e-2, atol=1e-3), (out3, ref3)

    print("KERNEL_OK")
</pallas_src>

<mosaic_0001>
module attributes {stable_mosaic.version = 11 : i64} {
  func.func @_focal_loss_kernel(%arg0: i32, %arg1: memref<16x128xf32, #tpu.memory_space<vmem>>, %arg2: memref<16x128xf32, #tpu.memory_space<vmem>>, %arg3: memref<8x128xf32, #tpu.memory_space<vmem>>) attributes {dimension_semantics = [#tpu.dimension_semantics<arbitrary>], iteration_bounds = array<i64: 1>, scalar_prefetch = 0 : i64, scratch_operands = 0 : i64, tpu.core_type = #tpu.core_type<tc>, window_params = [{transform_indices = @transform_0, window_bounds = array<i64: 16, 128>}, {transform_indices = @transform_1, window_bounds = array<i64: 16, 128>}, {pipeline_mode = #tpu.pipeline_mode<synchronous>, transform_indices = @transform_2, window_bounds = array<i64: 8, 128>}]} {
    %c0 = arith.constant 0 : index
    %c0_0 = arith.constant 0 : index
    %0 = vector.load %arg1[%c0, %c0_0] : memref<16x128xf32, #tpu.memory_space<vmem>>, vector<16x128xf32>
    %c0_1 = arith.constant 0 : index
    %c0_2 = arith.constant 0 : index
    %1 = vector.load %arg2[%c0_1, %c0_2] : memref<16x128xf32, #tpu.memory_space<vmem>>, vector<16x128xf32>
    %2 = math.absf %0 : vector<16x128xf32>
    %cst = arith.constant 0.000000e+00 : f32
    %3 = vector.broadcast %cst : f32 to vector<16x128xf32>
    %4 = arith.subf %3, %2 : vector<16x128xf32>
    %5 = math.exp %4 : vector<16x128xf32>
    %cst_3 = arith.constant 0.000000e+00 : f32
    %6 = vector.broadcast %cst_3 : f32 to vector<16x128xf32>
    %7 = arith.maximumf %0, %6 : vector<16x128xf32>
    %8 = arith.mulf %0, %1 : vector<16x128xf32>
    %9 = arith.subf %7, %8 : vector<16x128xf32>
    %10 = math.log1p %5 : vector<16x128xf32>
    %11 = arith.addf %9, %10 : vector<16x128xf32>
    %cst_4 = arith.constant 0.000000e+00 : f32
    %12 = vector.broadcast %cst_4 : f32 to vector<16x128xf32>
    %13 = arith.subf %12, %11 : vector<16x128xf32>
    %14 = math.exp %13 : vector<16x128xf32>
    %cst_5 = arith.constant 1.000000e+00 : f32
    %15 = vector.broadcast %cst_5 : f32 to vector<16x128xf32>
    %16 = arith.subf %15, %14 : vector<16x128xf32>
    %17 = arith.mulf %16, %16 : vector<16x128xf32>
    %cst_6 = arith.constant 2.500000e-01 : f32
    %18 = vector.broadcast %cst_6 : f32 to vector<16x128xf32>
    %19 = arith.mulf %18, %17 : vector<16x128xf32>
    %20 = arith.mulf %19, %11 : vector<16x128xf32>
    %21 = vector.shape_cast %20 : vector<16x128xf32> to vector<2x8x128xf32>
    %cst_7 = arith.constant dense<0.000000e+00> : vector<8x128xf32>
    %22 = vector.multi_reduction <add>, %21, %cst_7 [0] : vector<2x8x128xf32> to vector<8x128xf32>
    %c0_i32 = arith.constant 0 : i32
    %23 = arith.cmpi eq, %arg0, %c0_i32 : i32
    %24 = arith.extui %23 : i1 to i32
    %c0_i32_8 = arith.constant 0 : i32
    %25 = arith.cmpi ne, %24, %c0_i32_8 : i32
    scf.if %25 {
      %cst_13 = arith.constant 0.000000e+00 : f32
      %29 = vector.broadcast %cst_13 : f32 to vector<8x128xf32>
      %c0_14 = arith.constant 0 : index
      %c0_15 = arith.constant 0 : index
      %30 = vector.load %arg3[%c0_14, %c0_15] : memref<8x128xf32, #tpu.memory_space<vmem>>, vector<8x128xf32>
      tpu.vector_store %arg3[%c0_14, %c0_15], %29 {strides = array<i32>} : memref<8x128xf32, #tpu.memory_space<vmem>>, vector<8x128xf32>,
    } else {
    }
    %c0_9 = arith.constant 0 : index
    %c0_10 = arith.constant 0 : index
    %26 = vector.load %arg3[%c0_9, %c0_10] : memref<8x128xf32, #tpu.memory_space<vmem>>, vector<8x128xf32>
    %27 = arith.addf %26, %22 : vector<8x128xf32>
    %c0_11 = arith.constant 0 : index
    %c0_12 = arith.constant 0 : index
    %28 = vector.load %arg3[%c0_11, %c0_12] : memref<8x128xf32, #tpu.memory_space<vmem>>, vector<8x128xf32>
    tpu.vector_store %arg3[%c0_11, %c0_12], %27 {strides = array<i32>} : memref<8x128xf32, #tpu.memory_space<vmem>>, vector<8x128xf32>,
    return
  }
  func.func @transform_0(%arg0: i32) -> (i32, i32) {
    %c0_i32 = arith.constant 0 : i32
    %c0_i32_0 = arith.constant 0 : i32
    return %arg0, %c0_i32 : i32, i32
  }
  func.func @transform_1(%arg0: i32) -> (i32, i32) {
    %c0_i32 = arith.constant 0 : i32
    %c0_i32_0 = arith.constant 0 : i32
    return %arg0, %c0_i32 : i32, i32
  }
  func.func @transform_2(%arg0: i32) -> (i32, i32) {
    %c0_i32 = arith.constant 0 : i32
    %c0_i32_0 = arith.constant 0 : i32
    %c0_i32_1 = arith.constant 0 : i32
    return %c0_i32, %c0_i32_0 : i32, i32
  }
}

</mosaic_0001>

<llo_original>
// kernel: tpu_custom_call.1
$region0: #{tpu_custom_call.1}
  #allocation0 [shape = 'u32[]', space=smem, size = 0x4, offset = 0x4, fixed_abs, tag = 'smem constant byte address 0x4 - core index']
  #allocation1 [shape = 'u32[72,128]{1,0:T(1,128)}', space=vmem, size = 0x9000, scoped, tag = 'internal scratch']
  %s0 = inlined_call_operand.hbm [shape: f32[16,128], index: 0, kind: input, shape index: {}]
  %s1 = inlined_call_operand.hbm [shape: f32[16,128], index: 1, kind: input, shape index: {}]
  %s2 = inlined_call_operand.hbm [shape: f32[8,128], index: 2, kind: output, shape index: {}]
  %s3 = sld [smem:[#allocation0]]
  $region30: #{tpu_custom_call.1} parent=0
    _
  %s5 = ssub.s32 1, %s3
  %s6 = scalar_select 0, %s5, %s3
  $region1: #{tpu_custom_call.1} parent=0
    #allocation2 [shape = 'u8[8192]{0}', space=vmem, size = 0x2000, scoped, tag = 'input window, operand 0, single buffered']
    #allocation3 [shape = 's32[1]{0}', space=sflag, size = 0x4, scoped, tag = 'scoped memory for tpu_custom_call.1']
    #allocation4 [shape = 's32[1]{0}', space=sflag, size = 0x4, scoped, tag = 'scoped memory for tpu_custom_call.1']
    #allocation5 [shape = 'u8[8192]{0}', space=vmem, size = 0x2000, scoped, tag = 'input window, operand 1, single buffered']
    #allocation6 [shape = 's32[1]{0}', space=sflag, size = 0x4, scoped, tag = 'scoped memory for tpu_custom_call.1']
    #allocation7 [shape = 'u8[4096]{0}', space=vmem, size = 0x1000, scoped, tag = 'output window, operand 0, single buffered']
    %7 = vsyncpa [#allocation3], 0
    %8 = vsyncpa [#allocation6], 0
    %9 = vsyncpa [#allocation4], 0
    // Predicated region
    $region2: #{tpu_custom_call.1} parent=1 // pred_check
      _
    $region3: #{tpu_custom_call.1} parent=1 // pred_check_branch
      %11 = sbr.rel (0) target = $region5
    $region4: #{tpu_custom_call.1} parent=1 // pred_region
      %13 = vsyncadd [#allocation3], 0
      %s14 = sshll.u32 %s0, 4
      %s15 = int_to_ptr.hbm [resolvable:$true] %s14
      %s16 = sshll.u32 [#allocation2], 4
      %s17 = int_to_ptr.vmem [resolvable:$true] %s16
      %22 = dma.hbm_to_vmem [thread:$0]  %s15, 256, %s17, [#allocation3], 128, 128, 8
    $region5: #{tpu_custom_call.1} parent=1 // pred_fallthru
      _
    // Predicated region
    $region6: #{tpu_custom_call.1} parent=1 // pred_check
      _
    $region7: #{tpu_custom_call.1} parent=1 // pred_check_branch
      %24 = sbr.rel (0) target = $region9
    $region8: #{tpu_custom_call.1} parent=1 // pred_region
      %26 = vsyncadd [#allocation6], 0
      %s27 = sshll.u32 %s1, 4
      %s28 = int_to_ptr.hbm [resolvable:$true] %s27
      %s29 = sshll.u32 [#allocation5], 4
      %s30 = int_to_ptr.vmem [resolvable:$true] %s29
      %35 = dma.hbm_to_vmem [thread:$0]  %s28, 256, %s30, [#allocation6], 128, 128, 8
    $region9: #{tpu_custom_call.1} parent=1 // pred_fallthru
      _
    // Predicated region
    $region10: #{tpu_custom_call.1} parent=1 // pred_check
      _
    $region11: #{tpu_custom_call.1} parent=1 // pred_check_branch
      %37 = sbr.rel (0) target = $region13
    $region12: #{tpu_custom_call.1} parent=1 // pred_region
      %39 = dma.done [#allocation3], 256
    $region13: #{tpu_custom_call.1} parent=1 // pred_fallthru
      _
    // Predicated region
    $region14: #{tpu_custom_call.1} parent=1 // pred_check
      _
    $region15: #{tpu_custom_call.1} parent=1 // pred_check_branch
      %41 = sbr.rel (0) target = $region17
    $region16: #{tpu_custom_call.1} parent=1 // pred_region
      %43 = dma.done [#allocation6], 256
    $region17: #{tpu_custom_call.1} parent=1 // pred_fallthru
      _
    %v44 = vld [vmem:[#allocation2] sm:$0xff]
    %v45 = vld [vmem:[#allocation2 + $0x8] sm:$0xff]
    %v46 = vld [vmem:[#allocation5] sm:$0xff]
    %v47 = vld [vmem:[#allocation5 + $0x8] sm:$0xff]
    %v48 = vand.u32 2147483647, %v44
    %v49 = vand.u32 2147483647, %v45
    %v50 = vsub.f32 0.0, %v48
    %v51 = vsub.f32 0.0, %v49
    %v52 = vmul.f32 %v50, 1.442695
    %v53 = vpow.pop %v52
    %v54 = vmul.f32 %v51, 1.442695
    %v55 = vpow.pop %v54
    %v56 = vmax.f32 %v44, 0.0
    %v57 = vmax.f32 %v45, 0.0
    %v58 = vmul.f32 %v44, %v46
    %v59 = vmul.f32 %v45, %v47
    %v60 = vsub.f32 %v56, %v58
    %v61 = vsub.f32 %v57, %v59
    %v62 = vadd.f32 %v53, 1.0
    %v63 = vlog2.pop %v62
    %v64 = vmul.f32 %v63, 0.6931472
    %v65 = vmul.f32 -0.5, %v53
    %v66 = vadd.f32 %v65, 1.0
    %v67 = vmul.f32 %v66, %v53
    %v68 = vand.u32 2147483647, %v53
    %vm69 = vcmp.lt.f32.partialorder %v68, 0.0004427343
    %v70 = vsel %vm69, %v67, %v64
    %v71 = vadd.f32 %v55, 1.0
    %v72 = vlog2.pop %v71
    %v73 = vmul.f32 %v72, 0.6931472
    %v74 = vmul.f32 -0.5, %v55
    %v75 = vadd.f32 %v74, 1.0
    %v76 = vmul.f32 %v75, %v55
    %v77 = vand.u32 2147483647, %v55
    %vm78 = vcmp.lt.f32.partialorder %v77, 0.0004427343
    %v79 = vsel %vm78, %v76, %v73
    %v80 = vadd.f32 %v60, %v70
    %v81 = vadd.f32 %v61, %v79
    %v82 = vsub.f32 0.0, %v80
    %v83 = vsub.f32 0.0, %v81
    %v84 = vmul.f32 %v82, 1.442695
    %v85 = vpow.pop %v84
    %v86 = vmul.f32 %v83, 1.442695
    %v87 = vpow.pop %v86
    %v88 = vsub.f32 1.0, %v85
    %v89 = vsub.f32 1.0, %v87
    %v90 = vmul.f32 %v88, %v88
    %v91 = vmul.f32 %v89, %v89
    %v92 = vmul.f32 %v90, 0.25
    %v93 = vmul.f32 %v91, 0.25
    %v94 = vmul.f32 %v92, %v80
    %v95 = vmul.f32 %v93, %v81
    %v96 = vadd.f32 %v94, %v95
    %p97 = scmp.eq.s32.totalorder 0, 0
    // Predicated region
    $region18: #{tpu_custom_call.1} parent=1 // pred_check
      %p98 = pneg %p97
    $region19: #{tpu_custom_call.1} parent=1 // pred_check_branch
      %100 = sbr.rel (%p98) target = $region21
    $region20: #{tpu_custom_call.1} parent=1 // pred_region
      %101 = vst [vmem:[#allocation7] sm:$0xff] 0.0
    $region21: #{tpu_custom_call.1} parent=1 // pred_fallthru
      _
    %v102 = vld [vmem:[#allocation7] sm:$0xff]
    %v103 = vadd.f32 %v102, %v96
    %104 = vst [vmem:[#allocation7] sm:$0xff] %v103
    // Predicated region
    $region22: #{tpu_custom_call.1} parent=1 // pred_check
      _
    $region23: #{tpu_custom_call.1} parent=1 // pred_check_branch
      %106 = sbr.rel (0) target = $region25
    $region24: #{tpu_custom_call.1} parent=1 // pred_region
      %108 = vsyncadd [#allocation4], 0
      %s110 = sshll.u32 [#allocation7], 4
      %s111 = int_to_ptr.vmem [resolvable:$true] %s110
      %s112 = sshll.u32 %s2, 4
      %s113 = int_to_ptr.hbm [resolvable:$true] %s112
      %115 = dma.vmem_to_hbm [thread:$0]  %s111, 128, %s113, [#allocation4]
    $region25: #{tpu_custom_call.1} parent=1 // pred_fallthru
      _
    // Predicated region
    $region26: #{tpu_custom_call.1} parent=1 // pred_check
      _
    $region27: #{tpu_custom_call.1} parent=1 // pred_check_branch
      %117 = sbr.rel (0) target = $region29
    $region28: #{tpu_custom_call.1} parent=1 // pred_region
      %119 = dma.done [#allocation4], 128
    $region29: #{tpu_custom_call.1} parent=1 // pred_fallthru
      _
    %120 = vsyncpa [#allocation3], 1
    %121 = vsyncpa [#allocation6], 1
    %122 = vsyncpa [#allocation4], 1

</llo_original>
